<compile_context>
chip_gen: v5e
topology: v5e:2x2
jax: 0.10.0
libtpu: 0.0.40
codegen_flags: <defaults>
</compile_context>

<pallas_src>
import jax
import jax.numpy as jnp
from jax.experimental import pallas as pl
from jax.experimental.pallas import tpu as pltpu


def _linear_kernel(x_ref, w_ref, b_ref, o_ref):
    """y = x @ W + b for one batch tile.

    x_ref: (tb, K)   w_ref: (K, O)   b_ref: (1, O)   o_ref: (tb, O)
    """
    y = jnp.dot(x_ref[...], w_ref[...], preferred_element_type=jnp.float32)
    o_ref[...] = (y + b_ref[...]).astype(o_ref.dtype)


def prepare_params(w3, b3):
    """One-time (init-time) parameter transform.

    PyTorch nn.Linear stores weight as (out, in); pre-transpose to (in, out)
    and reshape bias to a (1, out) row so the per-call path has zero extra ops.
    """
    return jnp.transpose(w3), b3.reshape(1, -1)


def prediction_mlp_forward(x, w_t, b_row, *, min_rows_per_core=256):
    """x: (N, in_dim) f32;  w_t: (in_dim, out_dim);  b_row: (1, out_dim)."""
    N, K = x.shape
    K2, O = w_t.shape
    assert K == K2, (K, K2)
    assert b_row.shape == (1, O), b_row.shape

    # 2-way batch split only when each core's tile amortizes the per-grid-step
    # overhead.  On 1-TC parts (v5e/v6e) a grid of (2,) is a serial loop and a
    # pure loss at small N; on v7x (2 TCs) the split only pays for big batches.
    if N % 2 == 0 and (N // 2) % 8 == 0 and (N // 2) >= min_rows_per_core:
        g, tb = 2, N // 2
    else:
        g, tb = 1, N

    itemsize = jnp.dtype(x.dtype).itemsize
    cost = pl.CostEstimate(
        flops=2 * N * K * O,
        transcendentals=0,
        bytes_accessed=(N * K + K * O + O + N * O) * itemsize,
    )

    out = pl.pallas_call(
        _linear_kernel,
        out_shape=jax.ShapeDtypeStruct((N, O), x.dtype),
        grid=(g,),
        in_specs=[
            pl.BlockSpec((tb, K), lambda i: (i, 0)),   # x tile
            pl.BlockSpec((K, O), lambda i: (0, 0)),    # weight (resident)
            pl.BlockSpec((1, O), lambda i: (0, 0)),    # bias (resident)
        ],
        out_specs=pl.BlockSpec((tb, O), lambda i: (i, 0)),
        compiler_params=pltpu.CompilerParams(dimension_semantics=("parallel",)),
        cost_estimate=cost,
    )(x, w_t, b_row)
    return out


def reference_forward(x, w3, b3):
    """Pure-JAX reference of prediction_MLP.forward (layer3 only)."""
    return x @ jnp.transpose(w3) + b3[None, :]


if __name__ == "__main__":
    # Module defaults: in_dim = hidden_dim = out_dim = 64.  Small batch.
    N, IN_DIM, OUT_DIM = 16, 64, 64

    key = jax.random.PRNGKey(0)
    kx, kw, kb = jax.random.split(key, 3)

    x = jax.random.normal(kx, (N, IN_DIM), jnp.float32)
    # layer3 = nn.Linear(in_dim, out_dim): weight (out, in), bias (out,).
    w3 = 0.1 * jax.random.normal(kw, (OUT_DIM, IN_DIM), jnp.float32)
    b3 = 0.1 * jax.random.normal(kb, (OUT_DIM,), jnp.float32)

    # Constant (init-time) parameter transform — not part of the per-call path.
    w_t, b_row = prepare_params(w3, b3)

    out = prediction_mlp_forward(x, w_t, b_row)
    out = jax.block_until_ready(out)

    ref = jax.block_until_ready(reference_forward(x, w3, b3))
    assert out.shape == (N, OUT_DIM), out.shape
    err = float(jnp.max(jnp.abs(out - ref)))
    assert jnp.allclose(out, ref, rtol=1e-3, atol=1e-3), err

    print("KERNEL_OK")
</pallas_src>

<mosaic_0001>
module attributes {stable_mosaic.version = 11 : i64} {
  func.func @_linear_kernel(%arg0: i32, %arg1: memref<16x64xf32, #tpu.memory_space<vmem>>, %arg2: memref<64x64xf32, #tpu.memory_space<vmem>>, %arg3: memref<1x64xf32, #tpu.memory_space<vmem>>, %arg4: memref<16x64xf32, #tpu.memory_space<vmem>>) attributes {dimension_semantics = [#tpu.dimension_semantics<parallel>], iteration_bounds = array<i64: 1>, scalar_prefetch = 0 : i64, scratch_operands = 0 : i64, tpu.core_type = #tpu.core_type<tc>, window_params = [{transform_indices = @transform_0, window_bounds = array<i64: 16, 64>}, {pipeline_mode = #tpu.pipeline_mode<synchronous>, transform_indices = @transform_1, window_bounds = array<i64: 64, 64>}, {pipeline_mode = #tpu.pipeline_mode<synchronous>, transform_indices = @transform_2, window_bounds = array<i64: 1, 64>}, {transform_indices = @transform_3, window_bounds = array<i64: 16, 64>}]} {
    %c0 = arith.constant 0 : index
    %c0_0 = arith.constant 0 : index
    %0 = vector.load %arg1[%c0, %c0_0] : memref<16x64xf32, #tpu.memory_space<vmem>>, vector<16x64xf32>
    %c0_1 = arith.constant 0 : index
    %c0_2 = arith.constant 0 : index
    %1 = vector.load %arg2[%c0_1, %c0_2] : memref<64x64xf32, #tpu.memory_space<vmem>>, vector<64x64xf32>
    %cst = arith.constant dense<0.000000e+00> : vector<16x64xf32>
    %2 = tpu.matmul %0, %1, %cst {dimension_numbers = #tpu.dot_dimension_numbers<[1], [0], [0], [1], [0, 0, 1, 1], [], []>} : vector<16x64xf32>, vector<64x64xf32>, vector<16x64xf32> -> vector<16x64xf32>
    %c0_3 = arith.constant 0 : index
    %c0_4 = arith.constant 0 : index
    %3 = vector.load %arg3[%c0_3, %c0_4] : memref<1x64xf32, #tpu.memory_space<vmem>>, vector<1x64xf32>
    %4 = vector.broadcast %3 : vector<1x64xf32> to vector<16x64xf32>
    %5 = arith.addf %2, %4 : vector<16x64xf32>
    %c0_5 = arith.constant 0 : index
    %c0_6 = arith.constant 0 : index
    %6 = vector.load %arg4[%c0_5, %c0_6] : memref<16x64xf32, #tpu.memory_space<vmem>>, vector<16x64xf32>
    tpu.vector_store %arg4[%c0_5, %c0_6], %5 {strides = array<i32>} : memref<16x64xf32, #tpu.memory_space<vmem>>, vector<16x64xf32>,
    return
  }
  func.func @transform_0(%arg0: i32) -> (i32, i32) {
    %c0_i32 = arith.constant 0 : i32
    %c0_i32_0 = arith.constant 0 : i32
    return %arg0, %c0_i32 : i32, i32
  }
  func.func @transform_1(%arg0: i32) -> (i32, i32) {
    %c0_i32 = arith.constant 0 : i32
    %c0_i32_0 = arith.constant 0 : i32
    %c0_i32_1 = arith.constant 0 : i32
    return %c0_i32, %c0_i32_0 : i32, i32
  }
  func.func @transform_2(%arg0: i32) -> (i32, i32) {
    %c0_i32 = arith.constant 0 : i32
    %c0_i32_0 = arith.constant 0 : i32
    %c0_i32_1 = arith.constant 0 : i32
    return %c0_i32, %c0_i32_0 : i32, i32
  }
  func.func @transform_3(%arg0: i32) -> (i32, i32) {
    %c0_i32 = arith.constant 0 : i32
    %c0_i32_0 = arith.constant 0 : i32
    return %arg0, %c0_i32 : i32, i32
  }
}

</mosaic_0001>

<llo_original>
// kernel: tpu_custom_call.1
$region0: #{tpu_custom_call.1}
  #allocation0 [shape = 'u32[]', space=smem, size = 0x4, offset = 0x4, fixed_abs, tag = 'smem constant byte address 0x4 - core index']
  #allocation1 [shape = 'u32[72,128]{1,0:T(1,128)}', space=vmem, size = 0x9000, scoped, tag = 'internal scratch']
  %s0 = inlined_call_operand.hbm [shape: f32[16,64], index: 0, kind: input, shape index: {}]
  %s1 = inlined_call_operand.hbm [shape: f32[64,64], index: 1, kind: input, shape index: {}]
  %s2 = inlined_call_operand.vmem [shape: f32[1,64], index: 2, kind: input, shape index: {}]
  %s3 = inlined_call_operand.hbm [shape: f32[16,64], index: 3, kind: output, shape index: {}]
  %s4 = sld [smem:[#allocation0]]
  $region30: #{tpu_custom_call.1} parent=0
    _
  %s6 = ssub.s32 1, %s4
  %s7 = scalar_select 0, %s6, %s4
  $region1: #{tpu_custom_call.1} parent=0
    #allocation2 [shape = 'u8[8192]{0}', space=vmem, size = 0x2000, scoped, tag = 'input window, operand 0, single buffered']
    #allocation3 [shape = 's32[1]{0}', space=sflag, size = 0x4, scoped, tag = 'scoped memory for tpu_custom_call.1']
    #allocation4 [shape = 's32[1]{0}', space=sflag, size = 0x4, scoped, tag = 'scoped memory for tpu_custom_call.1']
    #allocation5 [shape = 'u8[32768]{0}', space=vmem, size = 0x8000, scoped, tag = 'input window, operand 1, single buffered']
    #allocation6 [shape = 's32[1]{0}', space=sflag, size = 0x4, scoped, tag = 'scoped memory for tpu_custom_call.1']
    #allocation7 [shape = 'u8[8192]{0}', space=vmem, size = 0x2000, scoped, tag = 'output window, operand 0, single buffered']
    %8 = vsyncpa [#allocation3], 0
    %9 = vsyncpa [#allocation6], 0
    %10 = vsyncpa [#allocation4], 0
    // Predicated region
    $region2: #{tpu_custom_call.1} parent=1 // pred_check
      _
    $region3: #{tpu_custom_call.1} parent=1 // pred_check_branch
      %12 = sbr.rel (0) target = $region5
    $region4: #{tpu_custom_call.1} parent=1 // pred_region
      %14 = vsyncadd [#allocation3], 0
      %s15 = sshll.u32 %s0, 4
      %s16 = int_to_ptr.hbm [resolvable:$true] %s15
      %s17 = sshll.u32 [#allocation2], 4
      %s18 = int_to_ptr.vmem [resolvable:$true] %s17
      %23 = dma.hbm_to_vmem [thread:$0]  %s16, 256, %s18, [#allocation3], 128, 128, 8
    $region5: #{tpu_custom_call.1} parent=1 // pred_fallthru
      _
    // Predicated region
    $region6: #{tpu_custom_call.1} parent=1 // pred_check
      _
    $region7: #{tpu_custom_call.1} parent=1 // pred_check_branch
      %25 = sbr.rel (0) target = $region9
    $region8: #{tpu_custom_call.1} parent=1 // pred_region
      %27 = vsyncadd [#allocation6], 0
      %s28 = sshll.u32 %s1, 4
      %s29 = int_to_ptr.hbm [resolvable:$true] %s28
      %s30 = sshll.u32 [#allocation5], 4
      %s31 = int_to_ptr.vmem [resolvable:$true] %s30
      %36 = dma.hbm_to_vmem [thread:$0]  %s29, 1024, %s31, [#allocation6], 128, 128, 8
    $region9: #{tpu_custom_call.1} parent=1 // pred_fallthru
      _
    // Predicated region
    $region10: #{tpu_custom_call.1} parent=1 // pred_check
      _
    $region11: #{tpu_custom_call.1} parent=1 // pred_check_branch
      %38 = sbr.rel (0) target = $region13
    $region12: #{tpu_custom_call.1} parent=1 // pred_region
      _
    $region13: #{tpu_custom_call.1} parent=1 // pred_fallthru
      _
    // Predicated region
    $region14: #{tpu_custom_call.1} parent=1 // pred_check
      _
    $region15: #{tpu_custom_call.1} parent=1 // pred_check_branch
      %40 = sbr.rel (0) target = $region17
    $region16: #{tpu_custom_call.1} parent=1 // pred_region
      %42 = dma.done [#allocation3], 256
    $region17: #{tpu_custom_call.1} parent=1 // pred_fallthru
      _
    // Predicated region
    $region18: #{tpu_custom_call.1} parent=1 // pred_check
      _
    $region19: #{tpu_custom_call.1} parent=1 // pred_check_branch
      %44 = sbr.rel (0) target = $region21
    $region20: #{tpu_custom_call.1} parent=1 // pred_region
      %46 = dma.done [#allocation6], 1024
    $region21: #{tpu_custom_call.1} parent=1 // pred_fallthru
      _
    %v47 = vld [vmem:[#allocation2] sm:$0xff]
    %v48 = vld [vmem:[#allocation2 + $0x8] sm:$0xff]
    %v49 = vld [vmem:[#allocation5] sm:$0xff]
    %v50 = vld [vmem:[#allocation5 + $0x8] sm:$0xff]
    %v51 = vld [vmem:[#allocation5 + $0x10] sm:$0xff]
    %v52 = vld [vmem:[#allocation5 + $0x18] sm:$0xff]
    %v53 = vld [vmem:[#allocation5 + $0x20] sm:$0xff]
    %v54 = vld [vmem:[#allocation5 + $0x28] sm:$0xff]
    %v55 = vld [vmem:[#allocation5 + $0x30] sm:$0xff]
    %v56 = vld [vmem:[#allocation5 + $0x38] sm:$0xff]
    %v57 = vld [vmem:[%s2] sm:$0x1]
    %v59 = vperm.slane %v57, 0
    %vm61 = vcmask 523264
    %v63 = vsel %vm61, %v47, 0
    %v66 = vsel %vm61, %v48, 0
    %68 = vmatpush.msra.mxu0 0.0
    %69 = vmatpush.msra.mxu0 0.0
    %70 = vmatpush.msra.mxu0 0.0
    %71 = vmatpush.msra.mxu0 0.0
    %72 = vmatpush.msra.mxu0 0.0
    %73 = vmatpush.msra.mxu0 0.0
    %74 = vmatpush.msra.mxu0 0.0
    %75 = vmatpush.msra.mxu0 0.0
    %76 = vmatpush.msra.mxu0 %v56
    %77 = vmatpush.msra.mxu0 %v55
    %78 = vmatpush.msra.mxu0 %v54
    %79 = vmatpush.msra.mxu0 %v53
    %80 = vmatpush.msra.mxu0 %v52
    %81 = vmatpush.msra.mxu0 %v51
    %82 = vmatpush.msra.mxu0 %v50
    %83 = vmatpush.msra.mxu0 %v49
    %84 = vmatmul.f32.gmra.mxu0 %v63
    %v85 = vpop.f32.mrf.mxu0
    %v86 = vadd.f32 %v59, %v85
    %87 = vmatmul.f32.gmra.mxu0 %v66
    %v88 = vpop.f32.mrf.mxu0
    %v89 = vadd.f32 %v59, %v88
    %90 = vdwg.mxu0
    %91 = vst.msk [vmem:[#allocation7] sm:$0xff] %vm61, %v86
    %92 = vst.msk [vmem:[#allocation7 + $0x8] sm:$0xff] %vm61, %v89
    // Predicated region
    $region22: #{tpu_custom_call.1} parent=1 // pred_check
      _
    $region23: #{tpu_custom_call.1} parent=1 // pred_check_branch
      %94 = sbr.rel (0) target = $region25
    $region24: #{tpu_custom_call.1} parent=1 // pred_region
      %96 = vsyncadd [#allocation4], 0
      %s97 = sshll.u32 [#allocation7], 4
      %s98 = int_to_ptr.vmem [resolvable:$true] %s97
      %s99 = sshll.u32 %s3, 4
      %s100 = int_to_ptr.hbm [resolvable:$true] %s99
      %105 = dma.vmem_to_hbm [thread:$0]  %s98, 256, %s100, [#allocation4], 128, 128, 8
    $region25: #{tpu_custom_call.1} parent=1 // pred_fallthru
      _
    // Predicated region
    $region26: #{tpu_custom_call.1} parent=1 // pred_check
      _
    $region27: #{tpu_custom_call.1} parent=1 // pred_check_branch
      %107 = sbr.rel (0) target = $region29
    $region28: #{tpu_custom_call.1} parent=1 // pred_region
      %109 = dma.done [#allocation4], 256
    $region29: #{tpu_custom_call.1} parent=1 // pred_fallthru
      _
    %110 = vsyncpa [#allocation3], 1
    %111 = vsyncpa [#allocation6], 1
    %112 = vsyncpa [#allocation4], 1

</llo_original>
